<compile_context>
chip_gen: v6e
topology: v6e:2x2x1
jax: 0.10.0
libtpu: 0.0.40
codegen_flags: <defaults>
</compile_context>

<pallas_src>
import jax
import jax.numpy as jnp
from jax.experimental import pallas as pl
from jax.experimental.pallas import tpu as pltpu


def _round_up(x, m):
    return (x + m - 1) // m * m


def _padded_vmem_bytes(rows, cols, itemsize):
    """VMEM bytes of one (rows, cols) block incl. (sublane, lane) tile padding."""
    sublane = 8 * (4 // itemsize) if itemsize < 4 else 8   # (8,128) f32 / (16,128) bf16
    return _round_up(max(rows, 1), sublane) * _round_up(max(cols, 1), 128) * itemsize


def _pruning_kernel(x_ref, w_ref, b_ref, pred_ref, mask_ref):
    x = x_ref[...]                     # (TB, dim_in)       f32 or bf16
    w = w_ref[...]                     # (dim_in, dim_out)  pre-transposed, resident
    b = b_ref[...]                     # (1, dim_out)       f32, resident

    # Linear: x @ W_t + b, f32 accumulation on the MXU.
    pred = jnp.dot(x, w, preferred_element_type=jnp.float32) + b
    pred_ref[...] = pred.astype(pred_ref.dtype)

    # mask = (argmax over dim 1 != 0)  <=>  some class strictly beats class 0.
    maxv = jnp.max(pred, axis=1, keepdims=True)              # (TB, 1)
    mask_ref[...] = (maxv > pred[:, 0:1]).astype(jnp.int32)  # (TB, 1)


def pruning_forward(x, weight, bias, *, tile_rows=8192, compute_dtype=None):
    """x: (B, dim_in); weight: (dim_out, dim_in); bias: (dim_out,).

    Returns (mask: (B,) bool, prediction: (B, dim_out) f32), matching the
    PyTorch module's forward. `compute_dtype=jnp.bfloat16` optionally casts
    x/weight for ~2x less HBM read traffic (f32 accumulation kept).
    """
    B, dim_in = x.shape
    dim_out, dim_in_w = weight.shape
    assert dim_in_w == dim_in

    in_dtype = jnp.dtype(compute_dtype) if compute_dtype is not None else jnp.dtype(x.dtype)
    isz = in_dtype.itemsize

    # --- row-tile selection -------------------------------------------------
    # Big tiles amortize the ~0.35 us/step pipeline cost; keep >=2 grid steps
    # when possible so the "parallel" batch axis lands on both v7x TensorCores.
    cap = max(8, (int(tile_rows) // 8) * 8)
    tb = min(B, cap, _round_up(pl.cdiv(B, 2), 8))
    tb = max(tb, 1)
    grid = (pl.cdiv(B, tb),)

    # --- explicit VMEM budget (lane-padded, double-buffered) -----------------
    block_bytes = (
        _padded_vmem_bytes(tb, dim_in, isz)          # x tile
        + _padded_vmem_bytes(dim_in, dim_out, isz)   # weight (resident)
        + _padded_vmem_bytes(1, dim_out, 4)          # bias (resident)
        + _padded_vmem_bytes(tb, dim_out, 4)         # prediction tile
        + _padded_vmem_bytes(tb, 1, 4)               # mask tile
    )
    vmem_limit = 2 * block_bytes + (2 << 20)         # double buffering + margin
    vmem_limit = int(min(max(vmem_limit, 16 << 20), 64 << 20))

    # --- one-time wrapper-side prep ------------------------------------------
    x_in = x.astype(in_dtype)
    w_t = weight.astype(in_dtype).T                  # (dim_in, dim_out), ~2.5 KB copy
    b2 = bias.astype(jnp.float32).reshape(1, dim_out)

    cost = pl.CostEstimate(
        flops=2 * B * dim_in * dim_out,
        transcendentals=0,
        bytes_accessed=(B * dim_in * isz + dim_in * dim_out * isz
                        + dim_out * 4 + B * dim_out * 4 + B * 4),
    )

    pred, mask_i32 = pl.pallas_call(
        _pruning_kernel,
        out_shape=(
            jax.ShapeDtypeStruct((B, dim_out), jnp.float32),
            jax.ShapeDtypeStruct((B, 1), jnp.int32),
        ),
        grid=grid,
        in_specs=[
            pl.BlockSpec((tb, dim_in), lambda i: (i, 0)),        # x tile
            pl.BlockSpec((dim_in, dim_out), lambda i: (0, 0)),   # weight (resident)
            pl.BlockSpec((1, dim_out), lambda i: (0, 0)),        # bias   (resident)
        ],
        out_specs=(
            pl.BlockSpec((tb, dim_out), lambda i: (i, 0)),       # prediction
            pl.BlockSpec((tb, 1), lambda i: (i, 0)),             # mask
        ),
        compiler_params=pltpu.CompilerParams(
            dimension_semantics=("parallel",),
            vmem_limit_bytes=vmem_limit,
        ),
        cost_estimate=cost,
    )(x_in, w_t, b2)

    mask = mask_i32[:, 0].astype(jnp.bool_)          # (B,) bool, like `!= 0`
    return mask, pred


if __name__ == "__main__":
    dim_in, dim_out = 32, 20

    key = jax.random.PRNGKey(0)
    kx, kw, kb, kx2 = jax.random.split(key, 4)

    # Deterministic "Linear" parameters (PyTorch-style uniform init bounds).
    bound = 1.0 / (dim_in ** 0.5)
    weight = jax.random.uniform(kw, (dim_out, dim_in), jnp.float32, -bound, bound)
    bias = jax.random.uniform(kb, (dim_out,), jnp.float32, -bound, bound)

    # --- small, single-block path --------------------------------------------
    B = 8
    x = jax.random.normal(kx, (B, dim_in), jnp.float32)
    mask, prediction = pruning_forward(x, weight, bias)
    jax.block_until_ready((mask, prediction))

    pred_ref = x @ weight.T + bias
    mask_ref = jnp.argmax(pred_ref, axis=1) != 0
    assert prediction.shape == (B, dim_out) and prediction.dtype == jnp.float32
    assert mask.shape == (B,) and mask.dtype == jnp.bool_
    assert jnp.allclose(prediction, pred_ref, atol=1e-5)
    assert jnp.array_equal(mask, mask_ref)

    # --- gridded path: multiple row tiles + ragged last tile (B % 8 != 0) ----
    B2 = 203
    x2 = jax.random.normal(kx2, (B2, dim_in), jnp.float32)
    mask2, prediction2 = pruning_forward(x2, weight, bias, tile_rows=64)
    jax.block_until_ready((mask2, prediction2))

    pred_ref2 = x2 @ weight.T + bias
    mask_ref2 = jnp.argmax(pred_ref2, axis=1) != 0
    assert jnp.allclose(prediction2, pred_ref2, atol=1e-5)
    assert jnp.array_equal(mask2, mask_ref2)

    # --- optional bf16-input path (f32 accumulation; looser tolerance) -------
    mask3, prediction3 = pruning_forward(x2, weight, bias, tile_rows=64,
                                         compute_dtype=jnp.bfloat16)
    jax.block_until_ready((mask3, prediction3))
    assert prediction3.shape == (B2, dim_out) and prediction3.dtype == jnp.float32
    assert jnp.allclose(prediction3, pred_ref2, atol=0.1, rtol=0.1)

    print("KERNEL_OK")
</pallas_src>

<mosaic_0001>
module attributes {stable_mosaic.version = 11 : i64} {
  func.func @_pruning_kernel(%arg0: i32, %arg1: memref<8x32xf32, #tpu.memory_space<vmem>>, %arg2: memref<32x20xf32, #tpu.memory_space<vmem>>, %arg3: memref<1x20xf32, #tpu.memory_space<vmem>>, %arg4: memref<8x20xf32, #tpu.memory_space<vmem>>, %arg5: memref<8x1xi32, #tpu.memory_space<vmem>>) attributes {dimension_semantics = [#tpu.dimension_semantics<parallel>], iteration_bounds = array<i64: 1>, scalar_prefetch = 0 : i64, scratch_operands = 0 : i64, tpu.core_type = #tpu.core_type<tc>, window_params = [{transform_indices = @transform_0, window_bounds = array<i64: 8, 32>}, {pipeline_mode = #tpu.pipeline_mode<synchronous>, transform_indices = @transform_1, window_bounds = array<i64: 32, 20>}, {pipeline_mode = #tpu.pipeline_mode<synchronous>, transform_indices = @transform_2, window_bounds = array<i64: 1, 20>}, {transform_indices = @transform_3, window_bounds = array<i64: 8, 20>}, {transform_indices = @transform_4, window_bounds = array<i64: 8, 1>}]} {
    %c0 = arith.constant 0 : index
    %c0_0 = arith.constant 0 : index
    %0 = vector.load %arg1[%c0, %c0_0] : memref<8x32xf32, #tpu.memory_space<vmem>>, vector<8x32xf32>
    %c0_1 = arith.constant 0 : index
    %c0_2 = arith.constant 0 : index
    %1 = vector.load %arg2[%c0_1, %c0_2] : memref<32x20xf32, #tpu.memory_space<vmem>>, vector<32x20xf32>
    %c0_3 = arith.constant 0 : index
    %c0_4 = arith.constant 0 : index
    %2 = vector.load %arg3[%c0_3, %c0_4] : memref<1x20xf32, #tpu.memory_space<vmem>>, vector<1x20xf32>
    %cst = arith.constant dense<0.000000e+00> : vector<8x20xf32>
    %3 = tpu.matmul %0, %1, %cst {dimension_numbers = #tpu.dot_dimension_numbers<[1], [0], [0], [1], [0, 0, 1, 1], [], []>} : vector<8x32xf32>, vector<32x20xf32>, vector<8x20xf32> -> vector<8x20xf32>
    %4 = vector.broadcast %2 : vector<1x20xf32> to vector<8x20xf32>
    %5 = arith.addf %3, %4 : vector<8x20xf32>
    %c0_5 = arith.constant 0 : index
    %c0_6 = arith.constant 0 : index
    %6 = vector.load %arg4[%c0_5, %c0_6] : memref<8x20xf32, #tpu.memory_space<vmem>>, vector<8x20xf32>
    tpu.vector_store %arg4[%c0_5, %c0_6], %5 {strides = array<i32>} : memref<8x20xf32, #tpu.memory_space<vmem>>, vector<8x20xf32>,
    %cst_7 = arith.constant dense<0xFF800000> : vector<8xf32>
    %7 = vector.multi_reduction <maximumf>, %5, %cst_7 [1] : vector<8x20xf32> to vector<8xf32>
    %8 = vector.shape_cast %7 : vector<8xf32> to vector<8x1xf32>
    %9 = vector.extract_strided_slice %5 {offsets = [0, 0], sizes = [8, 1], strides = [1, 1]} : vector<8x20xf32> to vector<8x1xf32>
    %10 = arith.cmpf ogt, %8, %9 : vector<8x1xf32>
    %11 = arith.extui %10 : vector<8x1xi1> to vector<8x1xi32>
    %c0_8 = arith.constant 0 : index
    %c0_9 = arith.constant 0 : index
    %12 = vector.load %arg5[%c0_8, %c0_9] : memref<8x1xi32, #tpu.memory_space<vmem>>, vector<8x1xi32>
    tpu.vector_store %arg5[%c0_8, %c0_9], %11 {strides = array<i32>} : memref<8x1xi32, #tpu.memory_space<vmem>>, vector<8x1xi32>,
    return
  }
  func.func @transform_0(%arg0: i32) -> (i32, i32) {
    %c0_i32 = arith.constant 0 : i32
    %c0_i32_0 = arith.constant 0 : i32
    return %arg0, %c0_i32 : i32, i32
  }
  func.func @transform_1(%arg0: i32) -> (i32, i32) {
    %c0_i32 = arith.constant 0 : i32
    %c0_i32_0 = arith.constant 0 : i32
    %c0_i32_1 = arith.constant 0 : i32
    return %c0_i32, %c0_i32_0 : i32, i32
  }
  func.func @transform_2(%arg0: i32) -> (i32, i32) {
    %c0_i32 = arith.constant 0 : i32
    %c0_i32_0 = arith.constant 0 : i32
    %c0_i32_1 = arith.constant 0 : i32
    return %c0_i32, %c0_i32_0 : i32, i32
  }
  func.func @transform_3(%arg0: i32) -> (i32, i32) {
    %c0_i32 = arith.constant 0 : i32
    %c0_i32_0 = arith.constant 0 : i32
    return %arg0, %c0_i32 : i32, i32
  }
  func.func @transform_4(%arg0: i32) -> (i32, i32) {
    %c0_i32 = arith.constant 0 : i32
    %c0_i32_0 = arith.constant 0 : i32
    return %arg0, %c0_i32 : i32, i32
  }
}

</mosaic_0001>

<llo_original>
// kernel: tpu_custom_call.1
$region0: #{tpu_custom_call.1}
  #allocation0 [shape = 'u32[]', space=smem, size = 0x4, offset = 0x4, fixed_abs, tag = 'smem constant byte address 0x4 - core index']
  #allocation1 [shape = 'u32[144,128]{1,0:T(1,128)}', space=vmem, size = 0x12000, scoped, tag = 'internal scratch']
  %s0 = inlined_call_operand.vmem [shape: f32[8,32], index: 0, kind: input, shape index: {}]
  %s1 = inlined_call_operand.vmem [shape: f32[32,20], index: 1, kind: input, shape index: {}]
  %s2 = inlined_call_operand.vmem [shape: f32[1,20], index: 2, kind: input, shape index: {}]
  %s3 = inlined_call_operand.hbm [shape: f32[8,20], index: 3, kind: output, shape index: {0}]
  %s4 = inlined_call_operand.vmem [shape: s32[8,1], index: 4, kind: output, shape index: {1}]
  %5 = xla_tuple %s3, %s4
  %s6 = sld [smem:[#allocation0]]
  $region30: #{tpu_custom_call.1} parent=0
    _
  %s8 = ssub.s32 1, %s6
  %s9 = scalar_select 0, %s8, %s6
  $region1: #{tpu_custom_call.1} parent=0
    #allocation2 [shape = 'u8[4096]{0}', space=vmem, size = 0x1000, scoped, tag = 'output window, operand 0, single buffered']
    #allocation3 [shape = 's32[1]{0}', space=sflag, size = 0x4, scoped, tag = 'scoped memory for tpu_custom_call.1']
    %10 = vsyncpa [#allocation3], 0
    // Predicated region
    $region2: #{tpu_custom_call.1} parent=1 // pred_check
      _
    $region3: #{tpu_custom_call.1} parent=1 // pred_check_branch
      %12 = sbr.rel (0) target = $region5
    $region4: #{tpu_custom_call.1} parent=1 // pred_region
      _
    $region5: #{tpu_custom_call.1} parent=1 // pred_fallthru
      _
    // Predicated region
    $region6: #{tpu_custom_call.1} parent=1 // pred_check
      _
    $region7: #{tpu_custom_call.1} parent=1 // pred_check_branch
      %14 = sbr.rel (0) target = $region9
    $region8: #{tpu_custom_call.1} parent=1 // pred_region
      _
    $region9: #{tpu_custom_call.1} parent=1 // pred_fallthru
      _
    // Predicated region
    $region10: #{tpu_custom_call.1} parent=1 // pred_check
      _
    $region11: #{tpu_custom_call.1} parent=1 // pred_check_branch
      %16 = sbr.rel (0) target = $region13
    $region12: #{tpu_custom_call.1} parent=1 // pred_region
      _
    $region13: #{tpu_custom_call.1} parent=1 // pred_fallthru
      _
    %v17 = vld [vmem:[%s0] sm:$0xff]
    %v18 = vld [vmem:[%s1] sm:$0xff]
    %v19 = vld [vmem:[%s1 + $0x8] sm:$0xff]
    %v20 = vld [vmem:[%s1 + $0x10] sm:$0xff]
    %v21 = vld [vmem:[%s1 + $0x18] sm:$0xff]
    %v22 = vld [vmem:[%s2] sm:$0x1]
    %v24 = vlaneseq
    %v25 = vshrl.u32 %v24, 7
    %v26 = vsub.s32 0, %v25
    %v27 = vrot.slane %v22, %v26
    %vm29 = vcmask 261120
    %v31 = vsel %vm29, %v17, 0
    %33 = vmatprep.subr.mxu0 0.0
    %34 = vmatpush1.msra.mxu0 0.0
    %35 = vmatprep.subr.mxu0 0.0
    %36 = vmatpush1.msra.mxu0 0.0
    %37 = vmatprep.subr.mxu0 0.0
    %38 = vmatpush1.msra.mxu0 0.0
    %39 = vmatprep.subr.mxu0 0.0
    %40 = vmatpush1.msra.mxu0 0.0
    %41 = vmatprep.subr.mxu0 0.0
    %42 = vmatpush1.msra.mxu0 0.0
    %43 = vmatprep.subr.mxu0 0.0
    %44 = vmatpush1.msra.mxu0 0.0
    %45 = vmatprep.subr.mxu0 0.0
    %46 = vmatpush1.msra.mxu0 0.0
    %47 = vmatprep.subr.mxu0 0.0
    %48 = vmatpush1.msra.mxu0 0.0
    %49 = vmatprep.subr.mxu0 0.0
    %50 = vmatpush1.msra.mxu0 0.0
    %51 = vmatprep.subr.mxu0 0.0
    %52 = vmatpush1.msra.mxu0 0.0
    %53 = vmatprep.subr.mxu0 0.0
    %54 = vmatpush1.msra.mxu0 0.0
    %55 = vmatprep.subr.mxu0 0.0
    %56 = vmatpush1.msra.mxu0 0.0
    %57 = vmatprep.subr.mxu0 0.0
    %58 = vmatpush1.msra.mxu0 %v21
    %59 = vmatprep.subr.mxu0 0.0
    %60 = vmatpush1.msra.mxu0 %v20
    %61 = vmatprep.subr.mxu0 0.0
    %62 = vmatpush1.msra.mxu0 %v19
    %63 = vmatprep.subr.mxu0 0.0
    %64 = vmatpush1.msra.mxu0 %v18
    %65 = vmatprep.subr.mxu0 0.0
    %66 = vmatpush2.msra.mxu0 0.0
    %67 = vmatprep.subr.mxu0 0.0
    %68 = vmatpush2.msra.mxu0 0.0
    %69 = vmatprep.subr.mxu0 0.0
    %70 = vmatpush2.msra.mxu0 0.0
    %71 = vmatprep.subr.mxu0 0.0
    %72 = vmatpush2.msra.mxu0 0.0
    %73 = vmatprep.subr.mxu0 0.0
    %74 = vmatpush2.msra.mxu0 0.0
    %75 = vmatprep.subr.mxu0 0.0
    %76 = vmatpush2.msra.mxu0 0.0
    %77 = vmatprep.subr.mxu0 0.0
    %78 = vmatpush2.msra.mxu0 0.0
    %79 = vmatprep.subr.mxu0 0.0
    %80 = vmatpush2.msra.mxu0 0.0
    %81 = vmatprep.subr.mxu0 0.0
    %82 = vmatpush2.msra.mxu0 0.0
    %83 = vmatprep.subr.mxu0 0.0
    %84 = vmatpush2.msra.mxu0 0.0
    %85 = vmatprep.subr.mxu0 0.0
    %86 = vmatpush2.msra.mxu0 0.0
    %87 = vmatprep.subr.mxu0 0.0
    %88 = vmatpush2.msra.mxu0 0.0
    %89 = vmatprep.subr.mxu0 0.0
    %90 = vmatpush2.msra.mxu0 0.0
    %91 = vmatprep.subr.mxu0 0.0
    %92 = vmatpush2.msra.mxu0 0.0
    %93 = vmatprep.subr.mxu0 0.0
    %94 = vmatpush2.msra.mxu0 0.0
    %95 = vmatprep.subr.mxu0 0.0
    %96 = vmatpush2.msra.mxu0 0.0
    %97 = vmatprep.mubr.f32.mxu0 0.0
    %98 = vmatmul.mubr.f32.gmra.mxu0 %v31
    %v99 = vpop.f32.mrf.mxu0
    %v100 = vadd.f32 %v27, %v99
    %v101 = vpop.f32.mrf.mxu0
    %102 = vdwg.mxu0
    %vm103 = vcmask 162816
    %104 = vst.msk [vmem:[#allocation2] sm:$0xff] %vm103, %v100
    %v105 = vsel %vm103, %v100, -inf
    %106 = vmax.xlane.f32.xlu0 %v105
    %v107 = vpop.xlane.xlu0 %106
    %vm108 = vcmp.gt.f32.partialorder %v107, %v100
    %v109 = vsel %vm108, 1, 0
    %vm110 = vcmask 7168
    %111 = vst.msk [vmem:[%s4] sm:$0xff] %vm110, %v109
    // Predicated region
    $region14: #{tpu_custom_call.1} parent=1 // pred_check
      _
    $region15: #{tpu_custom_call.1} parent=1 // pred_check_branch
      %113 = sbr.rel (0) target = $region17
    $region16: #{tpu_custom_call.1} parent=1 // pred_region
      %s115 = ssub.s32 128, 128
      %116 = vsyncadd [#allocation3], %s115
      %s118 = sshll.u32 [#allocation2], 4
      %s119 = int_to_ptr.vmem [resolvable:$true] %s118
      %121 = dma.vmem_to_hbm [thread:$0]  %s119, 128, %s3, [#allocation3]
    $region17: #{tpu_custom_call.1} parent=1 // pred_fallthru
      _
    // Predicated region
    $region18: #{tpu_custom_call.1} parent=1 // pred_check
      _
    $region19: #{tpu_custom_call.1} parent=1 // pred_check_branch
      %123 = sbr.rel (0) target = $region21
    $region20: #{tpu_custom_call.1} parent=1 // pred_region
      _
    $region21: #{tpu_custom_call.1} parent=1 // pred_fallthru
      _
    // Predicated region
    $region22: #{tpu_custom_call.1} parent=1 // pred_check
      _
    $region23: #{tpu_custom_call.1} parent=1 // pred_check_branch
      %125 = sbr.rel (0) target = $region25
    $region24: #{tpu_custom_call.1} parent=1 // pred_region
      %126 = dma.done [#allocation3], 128
    $region25: #{tpu_custom_call.1} parent=1 // pred_fallthru
      _
    // Predicated region
    $region26: #{tpu_custom_call.1} parent=1 // pred_check
      _
    $region27: #{tpu_custom_call.1} parent=1 // pred_check_branch
      %128 = sbr.rel (0) target = $region29
    $region28: #{tpu_custom_call.1} parent=1 // pred_region
      _
    $region29: #{tpu_custom_call.1} parent=1 // pred_fallthru
      _
    %129 = vsyncpa [#allocation3], 1

</llo_original>
